<compile_context>
chip_gen: v7x
topology: tpu7x:2x2x1
jax: 0.10.0
libtpu: 0.0.40
codegen_flags: <defaults>
</compile_context>

<pallas_src>
import functools

import jax
import jax.numpy as jnp
from jax.experimental import pallas as pl
from jax.experimental.pallas import tpu as pltpu

INPUT_DIM = 61        # feature dim read as-is (block dim == full array dim)
H1, H2 = 32, 8        # sorted(config.values()) for config = {"h1": 32, "h2": 8}
OUT_DIM = 1


def _mlp_kernel(x_ref, w1_ref, b1_ref, w2_ref, b2_ref, w3_ref, b3_ref, o_ref):
    """Fused 3-layer MLP on one batch tile; result written as a lane-dense row."""
    x = x_ref[...]                                                  # (bm, 61)
    h = jnp.dot(x, w1_ref[...], preferred_element_type=jnp.float32) + b1_ref[...]
    h = jnp.maximum(h, 0.0)                                         # (bm, 32)
    h = jnp.dot(h, w2_ref[...], preferred_element_type=jnp.float32) + b2_ref[...]
    h = jnp.maximum(h, 0.0)                                         # (bm, 8)
    # Final 8->1 layer as a q@k^T-style contraction so the batch ends up on the
    # lane axis: (8,8) contract (bm,8) on their last dims -> (8, bm).  All 8
    # rows of w3_ref are identical copies of the true 8-vector, so every row of
    # o8 equals the desired output; take row 0.  No transpose of h is
    # materialized (transposed-RHS MXU feed).
    o8 = jax.lax.dot_general(
        w3_ref[...], h,
        dimension_numbers=(((1,), (1,)), ((), ())),
        preferred_element_type=jnp.float32)                         # (8, bm)
    b3 = b3_ref[0, 0]                                               # SMEM scalar
    o = jnp.maximum(o8[0:1, :] + b3, 0.0)                           # (1, bm)
    o_ref[...] = o.astype(o_ref.dtype)


def _choose_block_m(n, requested):
    """Batch tile: multiple of 128, as large as requested, with an even tile
    count (>= 2, best effort) when there is enough work so both v7x
    TensorCores stay busy.  No effect on correctness."""
    t = -(-n // 128)                              # batch in 128-row chunks
    c = max(1, min(int(requested) // 128, t))     # chunks per tile
    if t >= 2:
        nt = -(-t // c)
        if nt < 2 or nt % 2 == 1:
            nt = max(2, nt + (nt % 2))            # next even tile count
            c = max(1, -(-t // nt))
    return c * 128


@functools.partial(jax.jit, static_argnames=("block_m",))
def ctest_mlr_relu(x, params, *, block_m=8192):
    """Forward pass of CTestConfigMLR_ReLU.

    x:      (N, 61) float32 (any N; partial tiles handled by the pipeline).
    params: dict with w1 (61,32), b1 (1,32), w2 (32,8), b2 (1,8),
            w3 (8,1), b3 (1,1) -- weights stored transposed as (in, out).
    Returns (N, 1) float32.
    """
    n, d = x.shape
    assert d == INPUT_DIM

    bm = _choose_block_m(n, block_m)
    num_tiles = -(-n // bm)
    n_pad = num_tiles * bm                         # only the output row is padded

    w1 = params["w1"]                              # (61, 32)
    b1 = params["b1"]                              # (1, 32)
    w2 = params["w2"]                              # (32, 8)
    b2 = params["b2"]                              # (1, 8)
    # Replicate the final-layer weight vector into an (8, 8) matrix so the
    # q@k^T contraction in the kernel has a well-formed (>=8-row) lhs.
    w3_mat = jnp.tile(params["w3"].reshape(1, H2), (8, 1))          # (8, 8)
    b3 = params["b3"]                              # (1, 1) -> SMEM scalar

    param_bytes = 4 * (INPUT_DIM * H1 + H1 + H1 * H2 + H2 + H2 + 1)
    cost = pl.CostEstimate(
        flops=2 * n * (INPUT_DIM * H1 + H1 * H2 + H2),
        transcendentals=0,
        bytes_accessed=n * INPUT_DIM * 4 + n * 4 + param_bytes,
    )

    out_row = pl.pallas_call(
        _mlp_kernel,
        out_shape=jax.ShapeDtypeStruct((1, n_pad), jnp.float32),
        grid_spec=pltpu.PrefetchScalarGridSpec(
            num_scalar_prefetch=0,
            grid=(num_tiles,),
            in_specs=[
                pl.BlockSpec((bm, INPUT_DIM), lambda i: (i, 0)),    # x tile (no pad)
                pl.BlockSpec((INPUT_DIM, H1), lambda i: (0, 0)),    # w1
                pl.BlockSpec((1, H1), lambda i: (0, 0)),            # b1
                pl.BlockSpec((H1, H2), lambda i: (0, 0)),           # w2
                pl.BlockSpec((1, H2), lambda i: (0, 0)),            # b2
                pl.BlockSpec((8, H2), lambda i: (0, 0)),            # w3 (replicated)
                pl.BlockSpec(memory_space=pltpu.MemorySpace.SMEM),  # b3 scalar
            ],
            out_specs=pl.BlockSpec((1, bm), lambda i: (0, i)),      # lane-dense row
        ),
        compiler_params=pltpu.CompilerParams(
            dimension_semantics=("parallel",),
            vmem_limit_bytes=32 * 1024 * 1024,
        ),
        cost_estimate=cost,
    )(x, w1, b1, w2, b2, w3_mat, b3)

    return out_row[0, :n].reshape(n, OUT_DIM)


def init_params(key):
    """Synthetic init mirroring nn.Linear shapes (weights stored as (in, out))."""
    dims = (INPUT_DIM, H1, H2, OUT_DIM)
    params = {}
    for li, (fan_in, fan_out) in enumerate(zip(dims[:-1], dims[1:]), start=1):
        key, kw, kb = jax.random.split(key, 3)
        bound = 1.0 / jnp.sqrt(jnp.float32(fan_in))
        params[f"w{li}"] = jax.random.uniform(
            kw, (fan_in, fan_out), jnp.float32, -bound, bound)
        params[f"b{li}"] = jax.random.uniform(
            kb, (1, fan_out), jnp.float32, -bound, bound)
    return params


def reference_forward(x, params):
    h = x
    for li in range(1, 4):
        h = jnp.maximum(h @ params[f"w{li}"] + params[f"b{li}"], 0.0)
    return h


if __name__ == "__main__":
    key = jax.random.PRNGKey(0)
    key, kx1, kx2 = jax.random.split(key, 3)
    params = init_params(key)

    # Small case (single grid step, partial tile).
    x_small = jax.random.normal(kx1, (16, INPUT_DIM), jnp.float32)
    out_small = jax.block_until_ready(ctest_mlr_relu(x_small, params))
    ref_small = reference_forward(x_small, params)
    assert out_small.shape == (16, 1), out_small.shape
    assert jnp.allclose(out_small, ref_small, atol=1e-4, rtol=1e-4), (
        float(jnp.max(jnp.abs(out_small - ref_small))))

    # Non-multiple batch (exercises multi-step grid + partial last tile).
    x_big = jax.random.normal(kx2, (300, INPUT_DIM), jnp.float32)
    out_big = jax.block_until_ready(ctest_mlr_relu(x_big, params))
    ref_big = reference_forward(x_big, params)
    assert out_big.shape == (300, 1), out_big.shape
    assert jnp.allclose(out_big, ref_big, atol=1e-4, rtol=1e-4), (
        float(jnp.max(jnp.abs(out_big - ref_big))))

    print("KERNEL_OK")
</pallas_src>

<mosaic_0001>
module attributes {stable_mosaic.version = 11 : i64} {
  func.func @_mlp_kernel(%arg0: i32, %arg1: memref<128x61xf32, #tpu.memory_space<vmem>>, %arg2: memref<61x32xf32, #tpu.memory_space<vmem>>, %arg3: memref<1x32xf32, #tpu.memory_space<vmem>>, %arg4: memref<32x8xf32, #tpu.memory_space<vmem>>, %arg5: memref<1x8xf32, #tpu.memory_space<vmem>>, %arg6: memref<8x8xf32, #tpu.memory_space<vmem>>, %arg7: memref<1x1xf32, #tpu.memory_space<smem>>, %arg8: memref<1x128xf32, #tpu.memory_space<vmem>>) attributes {dimension_semantics = [#tpu.dimension_semantics<parallel>], iteration_bounds = array<i64: 1>, scalar_prefetch = 0 : i64, scratch_operands = 0 : i64, tpu.core_type = #tpu.core_type<tc>, window_params = [{transform_indices = @transform_0, window_bounds = array<i64: 128, 61>}, {pipeline_mode = #tpu.pipeline_mode<synchronous>, transform_indices = @transform_1, window_bounds = array<i64: 61, 32>}, {pipeline_mode = #tpu.pipeline_mode<synchronous>, transform_indices = @transform_2, window_bounds = array<i64: 1, 32>}, {pipeline_mode = #tpu.pipeline_mode<synchronous>, transform_indices = @transform_3, window_bounds = array<i64: 32, 8>}, {pipeline_mode = #tpu.pipeline_mode<synchronous>, transform_indices = @transform_4, window_bounds = array<i64: 1, 8>}, {pipeline_mode = #tpu.pipeline_mode<synchronous>, transform_indices = @transform_5, window_bounds = array<i64: 8, 8>}, {transform_indices = @transform_6, window_bounds = array<i64: 1, 1>}, {transform_indices = @transform_7, window_bounds = array<i64: 1, 128>}]} {
    %c0 = arith.constant 0 : index
    %c0_0 = arith.constant 0 : index
    %0 = vector.load %arg1[%c0, %c0_0] : memref<128x61xf32, #tpu.memory_space<vmem>>, vector<128x61xf32>
    %c0_1 = arith.constant 0 : index
    %c0_2 = arith.constant 0 : index
    %1 = vector.load %arg2[%c0_1, %c0_2] : memref<61x32xf32, #tpu.memory_space<vmem>>, vector<61x32xf32>
    %cst = arith.constant dense<0.000000e+00> : vector<128x32xf32>
    %2 = tpu.matmul %0, %1, %cst {dimension_numbers = #tpu.dot_dimension_numbers<[1], [0], [0], [1], [0, 0, 1, 1], [], []>} : vector<128x61xf32>, vector<61x32xf32>, vector<128x32xf32> -> vector<128x32xf32>
    %c0_3 = arith.constant 0 : index
    %c0_4 = arith.constant 0 : index
    %3 = vector.load %arg3[%c0_3, %c0_4] : memref<1x32xf32, #tpu.memory_space<vmem>>, vector<1x32xf32>
    %4 = vector.broadcast %3 : vector<1x32xf32> to vector<128x32xf32>
    %5 = arith.addf %2, %4 : vector<128x32xf32>
    %cst_5 = arith.constant 0.000000e+00 : f32
    %6 = vector.broadcast %cst_5 : f32 to vector<128x32xf32>
    %7 = arith.maximumf %5, %6 : vector<128x32xf32>
    %c0_6 = arith.constant 0 : index
    %c0_7 = arith.constant 0 : index
    %8 = vector.load %arg4[%c0_6, %c0_7] : memref<32x8xf32, #tpu.memory_space<vmem>>, vector<32x8xf32>
    %cst_8 = arith.constant dense<0.000000e+00> : vector<128x8xf32>
    %9 = tpu.matmul %7, %8, %cst_8 {dimension_numbers = #tpu.dot_dimension_numbers<[1], [0], [0], [1], [0, 0, 1, 1], [], []>} : vector<128x32xf32>, vector<32x8xf32>, vector<128x8xf32> -> vector<128x8xf32>
    %c0_9 = arith.constant 0 : index
    %c0_10 = arith.constant 0 : index
    %10 = vector.load %arg5[%c0_9, %c0_10] : memref<1x8xf32, #tpu.memory_space<vmem>>, vector<1x8xf32>
    %11 = vector.broadcast %10 : vector<1x8xf32> to vector<128x8xf32>
    %12 = arith.addf %9, %11 : vector<128x8xf32>
    %cst_11 = arith.constant 0.000000e+00 : f32
    %13 = vector.broadcast %cst_11 : f32 to vector<128x8xf32>
    %14 = arith.maximumf %12, %13 : vector<128x8xf32>
    %c0_12 = arith.constant 0 : index
    %c0_13 = arith.constant 0 : index
    %15 = vector.load %arg6[%c0_12, %c0_13] : memref<8x8xf32, #tpu.memory_space<vmem>>, vector<8x8xf32>
    %cst_14 = arith.constant dense<0.000000e+00> : vector<8x128xf32>
    %16 = tpu.matmul %15, %14, %cst_14 {dimension_numbers = #tpu.dot_dimension_numbers<[1], [1], [0], [0], [0, 0, 1, 0], [], []>} : vector<8x8xf32>, vector<128x8xf32>, vector<8x128xf32> -> vector<8x128xf32>
    %c0_15 = arith.constant 0 : index
    %c0_16 = arith.constant 0 : index
    %17 = memref.load %arg7[%c0_15, %c0_16] : memref<1x1xf32, #tpu.memory_space<smem>>
    %18 = vector.extract_strided_slice %16 {offsets = [0, 0], sizes = [1, 128], strides = [1, 1]} : vector<8x128xf32> to vector<1x128xf32>
    %19 = vector.broadcast %17 : f32 to vector<1x128xf32>
    %20 = arith.addf %18, %19 : vector<1x128xf32>
    %cst_17 = arith.constant 0.000000e+00 : f32
    %21 = vector.broadcast %cst_17 : f32 to vector<1x128xf32>
    %22 = arith.maximumf %20, %21 : vector<1x128xf32>
    %c0_18 = arith.constant 0 : index
    %c0_19 = arith.constant 0 : index
    %23 = vector.load %arg8[%c0_18, %c0_19] : memref<1x128xf32, #tpu.memory_space<vmem>>, vector<1x128xf32>
    tpu.vector_store %arg8[%c0_18, %c0_19], %22 {strides = array<i32>} : memref<1x128xf32, #tpu.memory_space<vmem>>, vector<1x128xf32>,
    return
  }
  func.func @transform_0(%arg0: i32) -> (i32, i32) {
    %c0_i32 = arith.constant 0 : i32
    %c0_i32_0 = arith.constant 0 : i32
    return %arg0, %c0_i32 : i32, i32
  }
  func.func @transform_1(%arg0: i32) -> (i32, i32) {
    %c0_i32 = arith.constant 0 : i32
    %c0_i32_0 = arith.constant 0 : i32
    %c0_i32_1 = arith.constant 0 : i32
    return %c0_i32, %c0_i32_0 : i32, i32
  }
  func.func @transform_2(%arg0: i32) -> (i32, i32) {
    %c0_i32 = arith.constant 0 : i32
    %c0_i32_0 = arith.constant 0 : i32
    %c0_i32_1 = arith.constant 0 : i32
    return %c0_i32, %c0_i32_0 : i32, i32
  }
  func.func @transform_3(%arg0: i32) -> (i32, i32) {
    %c0_i32 = arith.constant 0 : i32
    %c0_i32_0 = arith.constant 0 : i32
    %c0_i32_1 = arith.constant 0 : i32
    return %c0_i32, %c0_i32_0 : i32, i32
  }
  func.func @transform_4(%arg0: i32) -> (i32, i32) {
    %c0_i32 = arith.constant 0 : i32
    %c0_i32_0 = arith.constant 0 : i32
    %c0_i32_1 = arith.constant 0 : i32
    return %c0_i32, %c0_i32_0 : i32, i32
  }
  func.func @transform_5(%arg0: i32) -> (i32, i32) {
    %c0_i32 = arith.constant 0 : i32
    %c0_i32_0 = arith.constant 0 : i32
    %c0_i32_1 = arith.constant 0 : i32
    return %c0_i32, %c0_i32_0 : i32, i32
  }
  func.func @transform_6(%arg0: i32) -> (i32, i32) {
    %c0_i32 = arith.constant 0 : i32
    %c0_i32_0 = arith.constant 0 : i32
    %c0_i32_1 = arith.constant 0 : i32
    return %c0_i32, %c0_i32_0 : i32, i32
  }
  func.func @transform_7(%arg0: i32) -> (i32, i32) {
    %c0_i32 = arith.constant 0 : i32
    %c0_i32_0 = arith.constant 0 : i32
    return %c0_i32, %arg0 : i32, i32
  }
}

</mosaic_0001>

<llo_original>
// kernel: ctest_mlr_relu.1
$region0: #{ctest_mlr_relu.1}
  #allocation0 [shape = 'u32[]', space=smem, size = 0x4, offset = 0x4, fixed_abs, tag = 'smem constant byte address 0x4 - core index']
  #allocation1 [shape = 'u32[144,128]{1,0:T(1,128)}', space=vmem, size = 0x12000, scoped, tag = 'internal scratch']
  #allocation2 [shape = 'f32[1,1]{1,0:T(1,128)S(6)}', space=smem, size = 0x200, scoped, tag = 'scoped memory for ctest_mlr_relu.1']
  %s0 = inlined_call_operand.vmem [shape: f32[16,61], index: 0, kind: input, shape index: {}]
  %s1 = inlined_call_operand.vmem [shape: f32[61,32], index: 1, kind: input, shape index: {}]
  %s2 = inlined_call_operand.vmem [shape: f32[1,32], index: 2, kind: input, shape index: {}]
  %s3 = inlined_call_operand.vmem [shape: f32[32,8], index: 3, kind: input, shape index: {}]
  %s4 = inlined_call_operand.vmem [shape: f32[1,8], index: 4, kind: input, shape index: {}]
  %s5 = inlined_call_operand.vmem [shape: f32[8,8], index: 5, kind: input, shape index: {}]
  %s6 = inlined_call_operand.<no memory space> [shape: f32[1,1], index: 6, kind: input, shape index: {}]
  %s7 = inlined_call_operand.vmem [shape: f32[1,128], index: 7, kind: output, shape index: {}]
  %s8 = sld [smem:[#allocation0]]
  $region38: #{ctest_mlr_relu.1} parent=0
    _
  %s10 = ssub.s32 1, %s8
  %s11 = scalar_select 0, %s10, %s8
  %12 = sst [smem:[#allocation2]] %s6
  // Predicated region
  $region2: #{ctest_mlr_relu.1} parent=0 // pred_check
    _
  $region3: #{ctest_mlr_relu.1} parent=0 // pred_check_branch
    %14 = sbr.rel (0) target = $region5
  $region4: #{ctest_mlr_relu.1} parent=0 // pred_region
    _
  $region5: #{ctest_mlr_relu.1} parent=0 // pred_fallthru
    _
  // Predicated region
  $region6: #{ctest_mlr_relu.1} parent=0 // pred_check
    _
  $region7: #{ctest_mlr_relu.1} parent=0 // pred_check_branch
    %16 = sbr.rel (0) target = $region9
  $region8: #{ctest_mlr_relu.1} parent=0 // pred_region
    _
  $region9: #{ctest_mlr_relu.1} parent=0 // pred_fallthru
    _
  // Predicated region
  $region10: #{ctest_mlr_relu.1} parent=0 // pred_check
    _
  $region11: #{ctest_mlr_relu.1} parent=0 // pred_check_branch
    %18 = sbr.rel (0) target = $region13
  $region12: #{ctest_mlr_relu.1} parent=0 // pred_region
    _
  $region13: #{ctest_mlr_relu.1} parent=0 // pred_fallthru
    _
  // Predicated region
  $region14: #{ctest_mlr_relu.1} parent=0 // pred_check
    _
  $region15: #{ctest_mlr_relu.1} parent=0 // pred_check_branch
    %20 = sbr.rel (0) target = $region17
  $region16: #{ctest_mlr_relu.1} parent=0 // pred_region
    _
  $region17: #{ctest_mlr_relu.1} parent=0 // pred_fallthru
    _
  // Predicated region
  $region18: #{ctest_mlr_relu.1} parent=0 // pred_check
    _
  $region19: #{ctest_mlr_relu.1} parent=0 // pred_check_branch
    %22 = sbr.rel (0) target = $region21
  $region20: #{ctest_mlr_relu.1} parent=0 // pred_region
    _
  $region21: #{ctest_mlr_relu.1} parent=0 // pred_fallthru
    _
  // Predicated region
  $region22: #{ctest_mlr_relu.1} parent=0 // pred_check
    _
  $region23: #{ctest_mlr_relu.1} parent=0 // pred_check_branch
    %24 = sbr.rel (0) target = $region25
  $region24: #{ctest_mlr_relu.1} parent=0 // pred_region
    _
  $region25: #{ctest_mlr_relu.1} parent=0 // pred_fallthru
    _
  // Predicated region
  $region26: #{ctest_mlr_relu.1} parent=0 // pred_check
    _
  $region27: #{ctest_mlr_relu.1} parent=0 // pred_check_branch
    %26 = sbr.rel (0) target = $region29
  $region28: #{ctest_mlr_relu.1} parent=0 // pred_region
    _
  $region29: #{ctest_mlr_relu.1} parent=0 // pred_fallthru
    _
  %v27 = vld [vmem:[%s0] sm:$0xff]
  %v28 = vld [vmem:[%s0 + $0x8] sm:$0xff]
  %v29 = vld [vmem:[%s0 + $0x10] sm:$0xff]
  %v30 = vld [vmem:[%s0 + $0x18] sm:$0xff]
  %v31 = vld [vmem:[%s0 + $0x20] sm:$0xff]
  %v32 = vld [vmem:[%s0 + $0x28] sm:$0xff]
  %v33 = vld [vmem:[%s0 + $0x30] sm:$0xff]
  %v34 = vld [vmem:[%s0 + $0x38] sm:$0xff]
  %v35 = vld [vmem:[%s0 + $0x40] sm:$0xff]
  %v36 = vld [vmem:[%s0 + $0x48] sm:$0xff]
  %v37 = vld [vmem:[%s0 + $0x50] sm:$0xff]
  %v38 = vld [vmem:[%s0 + $0x58] sm:$0xff]
  %v39 = vld [vmem:[%s0 + $0x60] sm:$0xff]
  %v40 = vld [vmem:[%s0 + $0x68] sm:$0xff]
  %v41 = vld [vmem:[%s0 + $0x70] sm:$0xff]
  %v42 = vld [vmem:[%s0 + $0x78] sm:$0xff]
  %v43 = vld [vmem:[%s1] sm:$0xff]
  %v44 = vld [vmem:[%s1 + $0x8] sm:$0xff]
  %v45 = vld [vmem:[%s1 + $0x10] sm:$0xff]
  %v46 = vld [vmem:[%s1 + $0x18] sm:$0xff]
  %v47 = vld [vmem:[%s1 + $0x20] sm:$0xff]
  %v48 = vld [vmem:[%s1 + $0x28] sm:$0xff]
  %v49 = vld [vmem:[%s1 + $0x30] sm:$0xff]
  %v50 = vld [vmem:[%s1 + $0x38] sm:$0x1f]
  %v51 = vld [vmem:[%s2] sm:$0x1]
  %v53 = vlaneseq
  %v54 = vshrl.u32 %v53, 7
  %v55 = vsub.s32 0, %v54
  %v56 = vrot.slane %v51, %v55
  %vm58 = vcmask 498688
  %v60 = vsel %vm58, %v27, 0
  %v63 = vsel %vm58, %v28, 0
  %v66 = vsel %vm58, %v29, 0
  %v69 = vsel %vm58, %v30, 0
  %v72 = vsel %vm58, %v31, 0
  %v75 = vsel %vm58, %v32, 0
  %v78 = vsel %vm58, %v33, 0
  %v81 = vsel %vm58, %v34, 0
  %v84 = vsel %vm58, %v35, 0
  %v87 = vsel %vm58, %v36, 0
  %v90 = vsel %vm58, %v37, 0
  %v93 = vsel %vm58, %v38, 0
  %v96 = vsel %vm58, %v39, 0
  %v99 = vsel %vm58, %v40, 0
  %v102 = vsel %vm58, %v41, 0
  %v105 = vsel %vm58, %v42, 0
  %vm107 = vcmask 1044480
  %v109 = vsel %vm107, %v50, 0
  %111 = vmatprep.subr.mxu0 0.0
  %112 = vmatpush1.msra.mxu0 %v43
  %113 = vmatprep.subr.mxu0 0.0
  %114 = vmatpush1.msra.mxu0 %v44
  %115 = vmatprep.subr.mxu0 0.0
  %116 = vmatpush1.msra.mxu0 %v45
  %117 = vmatprep.subr.mxu0 0.0
  %118 = vmatpush1.msra.mxu0 %v46
  %119 = vmatprep.subr.mxu0 0.0
  %120 = vmatpush1.msra.mxu0 %v47
  %121 = vmatprep.subr.mxu0 0.0
  %122 = vmatpush1.msra.mxu0 %v48
  %123 = vmatprep.subr.mxu0 0.0
  %124 = vmatpush1.msra.mxu0 %v49
  %125 = vmatprep.subr.mxu0 0.0
  %126 = vmatpush1.msra.mxu0 %v109
  %127 = vmatprep.subr.mxu0 0.0
  %128 = vmatpush1.msra.mxu0 0.0
  %129 = vmatprep.subr.mxu0 0.0
  %130 = vmatpush1.msra.mxu0 0.0
  %131 = vmatprep.subr.mxu0 0.0
  %132 = vmatpush1.msra.mxu0 0.0
  %133 = vmatprep.subr.mxu0 0.0
  %134 = vmatpush1.msra.mxu0 0.0
  %135 = vmatprep.subr.mxu0 0.0
  %136 = vmatpush1.msra.mxu0 0.0
  %137 = vmatprep.subr.mxu0 0.0
  %138 = vmatpush1.msra.mxu0 0.0
  %139 = vmatprep.subr.mxu0 0.0
  %140 = vmatpush1.msra.mxu0 0.0
  %141 = vmatprep.subr.mxu0 0.0
  %142 = vmatpush1.msra.mxu0 0.0
  %143 = vmatprep.subr.mxu0 0.0
  %144 = vmatpush1.msra.mxu0 0.0
  %145 = vmatprep.subr.mxu0 0.0
  %146 = vmatpush1.msra.mxu0 0.0
  %147 = vmatprep.subr.mxu0 0.0
  %148 = vmatpush1.msra.mxu0 0.0
  %149 = vmatprep.subr.mxu0 0.0
  %150 = vmatpush1.msra.mxu0 0.0
  %151 = vmatprep.subr.mxu0 0.0
  %152 = vmatpush1.msra.mxu0 0.0
  %153 = vmatprep.subr.mxu0 0.0
  %154 = vmatpush1.msra.mxu0 0.0
  %155 = vmatprep.subr.mxu0 0.0
  %156 = vmatpush1.msra.mxu0 0.0
  %157 = vmatprep.subr.mxu0 0.0
  %158 = vmatpush1.msra.mxu0 0.0
  %159 = vmatprep.subr.mxu0 0.0
  %160 = vmatpush1.msra.mxu0 0.0
  %161 = vmatprep.subr.mxu0 0.0
  %162 = vmatpush1.msra.mxu0 0.0
  %163 = vmatprep.subr.mxu0 0.0
  %164 = vmatpush1.msra.mxu0 0.0
  %165 = vmatprep.subr.mxu0 0.0
  %166 = vmatpush1.msra.mxu0 0.0
  %167 = vmatprep.subr.mxu0 0.0
  %168 = vmatpush1.msra.mxu0 0.0
  %169 = vmatprep.subr.mxu0 0.0
  %170 = vmatpush1.msra.mxu0 0.0
  %171 = vmatprep.subr.mxu0 0.0
  %172 = vmatpush1.msra.mxu0 0.0
  %173 = vmatprep.subr.mxu0 0.0
  %174 = vmatpush1.msra.mxu0 0.0
  %175 = vmatprep.mubr.f32.mxu0 0.0
  %176 = vmatmul.mubr.f32.gmra.mrb[0].mxu0 %v60
  %v177 = vpop.f32.mrb[0].mxu0
  %v178 = vadd.f32 %v56, %v177
  %v179 = vpop.f32.mrb[0].mxu0
  %180 = vmatprep.mubr.f32.mxu0 0.0
  %181 = vmatmul.mubr.f32.gmra.mrb[0].mxu0 %v63
  %v182 = vpop.f32.mrb[0].mxu0
  %v183 = vadd.f32 %v56, %v182
  %v184 = vpop.f32.mrb[0].mxu0
  %185 = vmatprep.mubr.f32.mxu0 0.0
  %186 = vmatmul.mubr.f32.gmra.mrb[0].mxu0 %v66
  %v187 = vpop.f32.mrb[0].mxu0
  %v188 = vadd.f32 %v56, %v187
  %v189 = vpop.f32.mrb[0].mxu0
  %190 = vmatprep.mubr.f32.mxu0 0.0
  %191 = vmatmul.mubr.f32.gmra.mrb[0].mxu0 %v69
  %v192 = vpop.f32.mrb[0].mxu0
  %v193 = vadd.f32 %v56, %v192
  %v194 = vpop.f32.mrb[0].mxu0
  %195 = vmatprep.mubr.f32.mxu0 0.0
  %196 = vmatmul.mubr.f32.gmra.mrb[0].mxu0 %v72
  %v197 = vpop.f32.mrb[0].mxu0
  %v198 = vadd.f32 %v56, %v197
  %v199 = vpop.f32.mrb[0].mxu0
  %200 = vmatprep.mubr.f32.mxu0 0.0
  %201 = vmatmul.mubr.f32.gmra.mrb[0].mxu0 %v75
  %v202 = vpop.f32.mrb[0].mxu0
  %v203 = vadd.f32 %v56, %v202
  %v204 = vpop.f32.mrb[0].mxu0
  %205 = vmatprep.mubr.f32.mxu0 0.0
  %206 = vmatmul.mubr.f32.gmra.mrb[0].mxu0 %v78
  %v207 = vpop.f32.mrb[0].mxu0
  %v208 = vadd.f32 %v56, %v207
  %v209 = vpop.f32.mrb[0].mxu0
  %210 = vmatprep.mubr.f32.mxu0 0.0
  %211 = vmatmul.mubr.f32.gmra.mrb[0].mxu0 %v81
  %v212 = vpop.f32.mrb[0].mxu0
  %v213 = vadd.f32 %v56, %v212
  %v214 = vpop.f32.mrb[0].mxu0
  %215 = vmatprep.mubr.f32.mxu0 0.0
  %216 = vmatmul.mubr.f32.gmra.mrb[0].mxu0 %v84
  %v217 = vpop.f32.mrb[0].mxu0
  %v218 = vadd.f32 %v56, %v217
  %v219 = vpop.f32.mrb[0].mxu0
  %220 = vmatprep.mubr.f32.mxu0 0.0
  %221 = vmatmul.mubr.f32.gmra.mrb[0].mxu0 %v87
  %v222 = vpop.f32.mrb[0].mxu0
  %v223 = vadd.f32 %v56, %v222
  %v224 = vpop.f32.mrb[0].mxu0
  %225 = vmatprep.mubr.f32.mxu0 0.0
  %226 = vmatmul.mubr.f32.gmra.mrb[0].mxu0 %v90
  %v227 = vpop.f32.mrb[0].mxu0
  %v228 = vadd.f32 %v56, %v227
  %v229 = vpop.f32.mrb[0].mxu0
  %230 = vmatprep.mubr.f32.mxu0 0.0
  %231 = vmatmul.mubr.f32.gmra.mrb[0].mxu0 %v93
  %v232 = vpop.f32.mrb[0].mxu0
  %v233 = vadd.f32 %v56, %v232
  %v234 = vpop.f32.mrb[0].mxu0
  %235 = vmatprep.mubr.f32.mxu0 0.0
  %236 = vmatmul.mubr.f32.gmra.mrb[0].mxu0 %v96
  %v237 = vpop.f32.mrb[0].mxu0
  %v238 = vadd.f32 %v56, %v237
  %v239 = vpop.f32.mrb[0].mxu0
  %240 = vmatprep.mubr.f32.mxu0 0.0
  %241 = vmatmul.mubr.f32.gmra.mrb[0].mxu0 %v99
  %v242 = vpop.f32.mrb[0].mxu0
  %v243 = vadd.f32 %v56, %v242
  %v244 = vpop.f32.mrb[0].mxu0
  %245 = vmatprep.mubr.f32.mxu0 0.0
  %246 = vmatmul.mubr.f32.gmra.mrb[0].mxu0 %v102
  %v247 = vpop.f32.mrb[0].mxu0
  %v248 = vadd.f32 %v56, %v247
  %v249 = vpop.f32.mrb[0].mxu0
  %250 = vmatprep.mubr.f32.mxu0 0.0
  %251 = vmatmul.mubr.f32.gmra.mrb[0].mxu0 %v105
  %v252 = vpop.f32.mrb[0].mxu0
  %v253 = vadd.f32 %v56, %v252
  %v254 = vpop.f32.mrb[0].mxu0
  %255 = vdwg.mxu0
  %v256 = vmax.f32 %v178, 0.0
  %v257 = vmax.f32 %v183, 0.0
  %v258 = vmax.f32 %v188, 0.0
  %v259 = vmax.f32 %v193, 0.0
  %v260 = vmax.f32 %v198, 0.0
  %v261 = vmax.f32 %v203, 0.0
  %v262 = vmax.f32 %v208, 0.0
  %v263 = vmax.f32 %v213, 0.0
  %v264 = vmax.f32 %v218, 0.0
  %v265 = vmax.f32 %v223, 0.0
  %v266 = vmax.f32 %v228, 0.0
  %v267 = vmax.f32 %v233, 0.0
  %v268 = vmax.f32 %v238, 0.0
  %v269 = vmax.f32 %v243, 0.0
  %v270 = vmax.f32 %v248, 0.0
  %v271 = vmax.f32 %v253, 0.0
  %v272 = vld [vmem:[%s3] sm:$0xff]
  %v273 = vld [vmem:[%s3 + $0x8] sm:$0xff]
  %v274 = vld [vmem:[%s3 + $0x10] sm:$0xff]
  %v275 = vld [vmem:[%s3 + $0x18] sm:$0xff]
  %v276 = vld [vmem:[%s4] sm:$0x1]
  %v278 = vlaneseq
  %v279 = vshrl.u32 %v278, 7
  %v280 = vsub.s32 0, %v279
  %v281 = vrot.slane %v276, %v280
  %vm283 = vcmask 261120
  %v285 = vsel %vm283, %v256, 0
  %v288 = vsel %vm283, %v257, 0
  %v291 = vsel %vm283, %v258, 0
  %v294 = vsel %vm283, %v259, 0
  %v297 = vsel %vm283, %v260, 0
  %v300 = vsel %vm283, %v261, 0
  %v303 = vsel %vm283, %v262, 0
  %v306 = vsel %vm283, %v263, 0
  %v309 = vsel %vm283, %v264, 0
  %v312 = vsel %vm283, %v265, 0
  %v315 = vsel %vm283, %v266, 0
  %v318 = vsel %vm283, %v267, 0
  %v321 = vsel %vm283, %v268, 0
  %v324 = vsel %vm283, %v269, 0
  %v327 = vsel %vm283, %v270, 0
  %v330 = vsel %vm283, %v271, 0
  %332 = vmatprep.subr.mxu0 0.0
  %333 = vmatpush1.msra.mxu0 %v272
  %334 = vmatprep.subr.mxu0 0.0
  %335 = vmatpush1.msra.mxu0 %v273
  %336 = vmatprep.subr.mxu0 0.0
  %337 = vmatpush1.msra.mxu0 %v274
  %338 = vmatprep.subr.mxu0 0.0
  %339 = vmatpush1.msra.mxu0 %v275
  %340 = vmatprep.subr.mxu0 0.0
  %341 = vmatpush1.msra.mxu0 0.0
  %342 = vmatprep.subr.mxu0 0.0
  %343 = vmatpush1.msra.mxu0 0.0
  %344 = vmatprep.subr.mxu0 0.0
  %345 = vmatpush1.msra.mxu0 0.0
  %346 = vmatprep.subr.mxu0 0.0
  %347 = vmatpush1.msra.mxu0 0.0
  %348 = vmatprep.subr.mxu0 0.0
  %349 = vmatpush1.msra.mxu0 0.0
  %350 = vmatprep.subr.mxu0 0.0
  %351 = vmatpush1.msra.mxu0 0.0
  %352 = vmatprep.subr.mxu0 0.0
  %353 = vmatpush1.msra.mxu0 0.0
  %354 = vmatprep.subr.mxu0 0.0
  %355 = vmatpush1.msra.mxu0 0.0
  %356 = vmatprep.subr.mxu0 0.0
  %357 = vmatpush1.msra.mxu0 0.0
  %358 = vmatprep.subr.mxu0 0.0
  %359 = vmatpush1.msra.mxu0 0.0
  %360 = vmatprep.subr.mxu0 0.0
  %361 = vmatpush1.msra.mxu0 0.0
  %362 = vmatprep.subr.mxu0 0.0
  %363 = vmatpush1.msra.mxu0 0.0
  %364 = vmatprep.subr.mxu0 0.0
  %365 = vmatpush1.msra.mxu0 0.0
  %366 = vmatprep.subr.mxu0 0.0
  %367 = vmatpush1.msra.mxu0 0.0
  %368 = vmatprep.subr.mxu0 0.0
  %369 = vmatpush1.msra.mxu0 0.0
  %370 = vmatprep.subr.mxu0 0.0
  %371 = vmatpush1.msra.mxu0 0.0
  %372 = vmatprep.subr.mxu0 0.0
  %373 = vmatpush1.msra.mxu0 0.0
  %374 = vmatprep.subr.mxu0 0.0
  %375 = vmatpush1.msra.mxu0 0.0
  %376 = vmatprep.subr.mxu0 0.0
  %377 = vmatpush1.msra.mxu0 0.0
  %378 = vmatprep.subr.mxu0 0.0
  %379 = vmatpush1.msra.mxu0 0.0
  %380 = vmatprep.subr.mxu0 0.0
  %381 = vmatpush1.msra.mxu0 0.0
  %382 = vmatprep.subr.mxu0 0.0
  %383 = vmatpush1.msra.mxu0 0.0
  %384 = vmatprep.subr.mxu0 0.0
  %385 = vmatpush1.msra.mxu0 0.0
  %386 = vmatprep.subr.mxu0 0.0
  %387 = vmatpush1.msra.mxu0 0.0
  %388 = vmatprep.subr.mxu0 0.0
  %389 = vmatpush1.msra.mxu0 0.0
  %390 = vmatprep.subr.mxu0 0.0
  %391 = vmatpush1.msra.mxu0 0.0
  %392 = vmatprep.subr.mxu0 0.0
  %393 = vmatpush1.msra.mxu0 0.0
  %394 = vmatprep.subr.mxu0 0.0
  %395 = vmatpush1.msra.mxu0 0.0
  %396 = vmatprep.mubr.f32.mxu0 0.0
  %397 = vmatmul.mubr.f32.gmra.mrb[0].mxu0 %v285
  %v398 = vpop.f32.mrb[0].mxu0
  %v399 = vadd.f32 %v281, %v398
  %v400 = vpop.f32.mrb[0].mxu0
  %401 = vmatprep.mubr.f32.mxu0 0.0
  %402 = vmatmul.mubr.f32.gmra.mrb[0].mxu0 %v288
  %v403 = vpop.f32.mrb[0].mxu0
  %v404 = vadd.f32 %v281, %v403
  %v405 = vpop.f32.mrb[0].mxu0
  %406 = vmatprep.mubr.f32.mxu0 0.0
  %407 = vmatmul.mubr.f32.gmra.mrb[0].mxu0 %v291
  %v408 = vpop.f32.mrb[0].mxu0
  %v409 = vadd.f32 %v281, %v408
  %v410 = vpop.f32.mrb[0].mxu0
  %411 = vmatprep.mubr.f32.mxu0 0.0
  %412 = vmatmul.mubr.f32.gmra.mrb[0].mxu0 %v294
  %v413 = vpop.f32.mrb[0].mxu0
  %v414 = vadd.f32 %v281, %v413
  %v415 = vpop.f32.mrb[0].mxu0
  %416 = vmatprep.mubr.f32.mxu0 0.0
  %417 = vmatmul.mubr.f32.gmra.mrb[0].mxu0 %v297
  %v418 = vpop.f32.mrb[0].mxu0
  %v419 = vadd.f32 %v281, %v418
  %v420 = vpop.f32.mrb[0].mxu0
  %421 = vmatprep.mubr.f32.mxu0 0.0
  %422 = vmatmul.mubr.f32.gmra.mrb[0].mxu0 %v300
  %v423 = vpop.f32.mrb[0].mxu0
  %v424 = vadd.f32 %v281, %v423
  %v425 = vpop.f32.mrb[0].mxu0
  %426 = vmatprep.mubr.f32.mxu0 0.0
  %427 = vmatmul.mubr.f32.gmra.mrb[0].mxu0 %v303
  %v428 = vpop.f32.mrb[0].mxu0
  %v429 = vadd.f32 %v281, %v428
  %v430 = vpop.f32.mrb[0].mxu0
  %431 = vmatprep.mubr.f32.mxu0 0.0
  %432 = vmatmul.mubr.f32.gmra.mrb[0].mxu0 %v306
  %v433 = vpop.f32.mrb[0].mxu0
  %v434 = vadd.f32 %v281, %v433
  %v435 = vpop.f32.mrb[0].mxu0
  %436 = vmatprep.mubr.f32.mxu0 0.0
  %437 = vmatmul.mubr.f32.gmra.mrb[0].mxu0 %v309
  %v438 = vpop.f32.mrb[0].mxu0
  %v439 = vadd.f32 %v281, %v438
  %v440 = vpop.f32.mrb[0].mxu0
  %441 = vmatprep.mubr.f32.mxu0 0.0
  %442 = vmatmul.mubr.f32.gmra.mrb[0].mxu0 %v312
  %v443 = vpop.f32.mrb[0].mxu0
  %v444 = vadd.f32 %v281, %v443
  %v445 = vpop.f32.mrb[0].mxu0
  %446 = vmatprep.mubr.f32.mxu0 0.0
  %447 = vmatmul.mubr.f32.gmra.mrb[0].mxu0 %v315
  %v448 = vpop.f32.mrb[0].mxu0
  %v449 = vadd.f32 %v281, %v448
  %v450 = vpop.f32.mrb[0].mxu0
  %451 = vmatprep.mubr.f32.mxu0 0.0
  %452 = vmatmul.mubr.f32.gmra.mrb[0].mxu0 %v318
  %v453 = vpop.f32.mrb[0].mxu0
  %v454 = vadd.f32 %v281, %v453
  %v455 = vpop.f32.mrb[0].mxu0
  %456 = vmatprep.mubr.f32.mxu0 0.0
  %457 = vmatmul.mubr.f32.gmra.mrb[0].mxu0 %v321
  %v458 = vpop.f32.mrb[0].mxu0
  %v459 = vadd.f32 %v281, %v458
  %v460 = vpop.f32.mrb[0].mxu0
  %461 = vmatprep.mubr.f32.mxu0 0.0
  %462 = vmatmul.mubr.f32.gmra.mrb[0].mxu0 %v324
  %v463 = vpop.f32.mrb[0].mxu0
  %v464 = vadd.f32 %v281, %v463
  %v465 = vpop.f32.mrb[0].mxu0
  %466 = vmatprep.mubr.f32.mxu0 0.0
  %467 = vmatmul.mubr.f32.gmra.mrb[0].mxu0 %v327
  %v468 = vpop.f32.mrb[0].mxu0
  %v469 = vadd.f32 %v281, %v468
  %v470 = vpop.f32.mrb[0].mxu0
  %471 = vmatprep.mubr.f32.mxu0 0.0
  %472 = vmatmul.mubr.f32.gmra.mrb[0].mxu0 %v330
  %v473 = vpop.f32.mrb[0].mxu0
  %v474 = vadd.f32 %v281, %v473
  %v475 = vpop.f32.mrb[0].mxu0
  %476 = vdwg.mxu0
  %v477 = vmax.f32 %v399, 0.0
  %v478 = vmax.f32 %v404, 0.0
  %v479 = vmax.f32 %v409, 0.0
  %v480 = vmax.f32 %v414, 0.0
  %v481 = vmax.f32 %v419, 0.0
  %v482 = vmax.f32 %v424, 0.0
  %v483 = vmax.f32 %v429, 0.0
  %v484 = vmax.f32 %v434, 0.0
  %v485 = vmax.f32 %v439, 0.0
  %v486 = vmax.f32 %v444, 0.0
  %v487 = vmax.f32 %v449, 0.0
  %v488 = vmax.f32 %v454, 0.0
  %v489 = vmax.f32 %v459, 0.0
  %v490 = vmax.f32 %v464, 0.0
  %v491 = vmax.f32 %v469, 0.0
  %v492 = vmax.f32 %v474, 0.0
  %v493 = vld [vmem:[%s5] sm:$0xff]
  %vm494 = vcmask 64512
  %v496 = vsel %vm494, %v493, 0
  %v499 = vsel %vm494, %v477, 0
  %v502 = vsel %vm494, %v478, 0
  %v505 = vsel %vm494, %v479, 0
  %v508 = vsel %vm494, %v480, 0
  %v511 = vsel %vm494, %v481, 0
  %v514 = vsel %vm494, %v482, 0
  %v517 = vsel %vm494, %v483, 0
  %v520 = vsel %vm494, %v484, 0
  %v523 = vsel %vm494, %v485, 0
  %v526 = vsel %vm494, %v486, 0
  %v529 = vsel %vm494, %v487, 0
  %v532 = vsel %vm494, %v488, 0
  %v535 = vsel %vm494, %v489, 0
  %v538 = vsel %vm494, %v490, 0
  %v541 = vsel %vm494, %v491, 0
  %v544 = vsel %vm494, %v492, 0
  %546 = vmatprep.subr.mxu0 0.0
  %547 = vmatpush1.xpose.msra.mxu0 %v499
  %548 = vmatprep.subr.mxu0 0.0
  %549 = vmatpush1.xpose.msra.mxu0 %v502
  %550 = vmatprep.subr.mxu0 0.0
  %551 = vmatpush1.xpose.msra.mxu0 %v505
  %552 = vmatprep.subr.mxu0 0.0
  %553 = vmatpush1.xpose.msra.mxu0 %v508
  %554 = vmatprep.subr.mxu0 0.0
  %555 = vmatpush1.xpose.msra.mxu0 %v511
  %556 = vmatprep.subr.mxu0 0.0
  %557 = vmatpush1.xpose.msra.mxu0 %v514
  %558 = vmatprep.subr.mxu0 0.0
  %559 = vmatpush1.xpose.msra.mxu0 %v517
  %560 = vmatprep.subr.mxu0 0.0
  %561 = vmatpush1.xpose.msra.mxu0 %v520
  %562 = vmatprep.subr.mxu0 0.0
  %563 = vmatpush1.xpose.msra.mxu0 %v523
  %564 = vmatprep.subr.mxu0 0.0
  %565 = vmatpush1.xpose.msra.mxu0 %v526
  %566 = vmatprep.subr.mxu0 0.0
  %567 = vmatpush1.xpose.msra.mxu0 %v529
  %568 = vmatprep.subr.mxu0 0.0
  %569 = vmatpush1.xpose.msra.mxu0 %v532
  %570 = vmatprep.subr.mxu0 0.0
  %571 = vmatpush1.xpose.msra.mxu0 %v535
  %572 = vmatprep.subr.mxu0 0.0
  %573 = vmatpush1.xpose.msra.mxu0 %v538
  %574 = vmatprep.subr.mxu0 0.0
  %575 = vmatpush1.xpose.msra.mxu0 %v541
  %576 = vmatprep.subr.mxu0 0.0
  %577 = vmatpush1.xpose.msra.mxu0 %v544
  %578 = vmatprep.subr.mxu0 0.0
  %579 = vmatpush1.xpose.msra.mxu0 0.0
  %580 = vmatprep.subr.mxu0 0.0
  %581 = vmatpush1.xpose.msra.mxu0 0.0
  %582 = vmatprep.subr.mxu0 0.0
  %583 = vmatpush1.xpose.msra.mxu0 0.0
  %584 = vmatprep.subr.mxu0 0.0
  %585 = vmatpush1.xpose.msra.mxu0 0.0
  %586 = vmatprep.subr.mxu0 0.0
  %587 = vmatpush1.xpose.msra.mxu0 0.0
  %588 = vmatprep.subr.mxu0 0.0
  %589 = vmatpush1.xpose.msra.mxu0 0.0
  %590 = vmatprep.subr.mxu0 0.0
  %591 = vmatpush1.xpose.msra.mxu0 0.0
  %592 = vmatprep.subr.mxu0 0.0
  %593 = vmatpush1.xpose.msra.mxu0 0.0
  %594 = vmatprep.subr.mxu0 0.0
  %595 = vmatpush1.xpose.msra.mxu0 0.0
  %596 = vmatprep.subr.mxu0 0.0
  %597 = vmatpush1.xpose.msra.mxu0 0.0
  %598 = vmatprep.subr.mxu0 0.0
  %599 = vmatpush1.xpose.msra.mxu0 0.0
  %600 = vmatprep.subr.mxu0 0.0
  %601 = vmatpush1.xpose.msra.mxu0 0.0
  %602 = vmatprep.subr.mxu0 0.0
  %603 = vmatpush1.xpose.msra.mxu0 0.0
  %604 = vmatprep.subr.mxu0 0.0
  %605 = vmatpush1.xpose.msra.mxu0 0.0
  %606 = vmatprep.subr.mxu0 0.0
  %607 = vmatpush1.xpose.msra.mxu0 0.0
  %608 = vmatprep.subr.mxu0 0.0
  %609 = vmatpush1.xpose.msra.mxu0 0.0
  %610 = vmatprep.mubr.f32.mxu0 0.0
  %611 = vmatmul.mubr.f32.gmra.mrb[0].mxu0 %v496
  %v612 = vpop.f32.mrb[0].mxu0
  %v613 = vadd.f32 0.0, %v612
  %v614 = vpop.f32.mrb[0].mxu0
  %615 = vdwg.mxu0
  %s616 = sld [smem:[#allocation2]]
  %v617 = vstv %s616
  %v618 = vadd.f32 %v613, %v617
  %v619 = vmax.f32 %v618, 0.0
  %620 = vst [vmem:[%s7] sm:$0x1] %v619
  // Predicated region
  $region30: #{ctest_mlr_relu.1} parent=0 // pred_check
    _
  $region31: #{ctest_mlr_relu.1} parent=0 // pred_check_branch
    %622 = sbr.rel (0) target = $region33
  $region32: #{ctest_mlr_relu.1} parent=0 // pred_region
    _
  $region33: #{ctest_mlr_relu.1} parent=0 // pred_fallthru
    _
  // Predicated region
  $region34: #{ctest_mlr_relu.1} parent=0 // pred_check
    _
  $region35: #{ctest_mlr_relu.1} parent=0 // pred_check_branch
    %624 = sbr.rel (0) target = $region37
  $region36: #{ctest_mlr_relu.1} parent=0 // pred_region
    _
  $region37: #{ctest_mlr_relu.1} parent=0 // pred_fallthru
    _

</llo_original>
